<compile_context>
chip_gen: v7x
topology: tpu7x:2x2x1
jax: 0.10.0
libtpu: 0.0.40
codegen_flags: <defaults>
</compile_context>

<pallas_src>
import functools

import jax
import jax.numpy as jnp
from jax.experimental import pallas as pl
from jax.experimental.pallas import tpu as pltpu


def _softplus(x):
    # Matches torch.nn.Softplus(beta=1, threshold=20): x if x > 20 else log1p(exp(x)).
    # exp overflow for x > 20 is masked by the where (inf branch is discarded).
    return jnp.where(x > 20.0, x, jnp.log1p(jnp.exp(x)))


def _lipschitz_mlp_kernel(x_ref, w1_ref, b1_ref, w2_ref, b2_ref,
                          w3_ref, b3_ref, o_ref):
    """x -> lin1 -> softplus -> lin2 -> softplus -> lin3 (single output col)."""
    # bf16 operands into the MXU, f32 accumulation (preferred_element_type).
    x = x_ref[...].astype(jnp.bfloat16)

    h = jnp.dot(x, w1_ref[...], preferred_element_type=jnp.float32)
    h = h + b1_ref[...]                       # lin1 bias (f32)
    h = _softplus(h)                          # relu1 (Softplus, f32)

    h = jnp.dot(h.astype(jnp.bfloat16), w2_ref[...],
                preferred_element_type=jnp.float32)
    h = h + b2_ref[...]                       # lin2 bias (f32)
    h = _softplus(h)                          # relu2 (Softplus, f32)

    # lin3 has a single output unit: VPU multiply + cross-lane sum (XLU)
    # instead of a 128-lane padded matmul; padded lanes of w3 are zero so the
    # softplus(0)=ln2 padding columns of h contribute nothing.
    o = jnp.sum(h * w3_ref[...], axis=-1, keepdims=True) + b3_ref[...]
    o_ref[...] = o.astype(o_ref.dtype)


def _round_up(x, m):
    return (x + m - 1) // m * m


def prepare_params(params):
    """Pad/cast the parameter pytree ONCE (call outside the training/eval loop).

    params: w1 [dim,200], b1 [200], w2 [200,200], b2 [200], w3 [200,1], b3 [1]
            (already in [in, out] layout).
    Padded hidden units have zero weight rows/cols, so they never affect the
    real outputs.  w1/w2 are stored bf16 (MXU operands); biases and w3 stay f32.
    """
    dim, hid = params["w1"].shape
    h_pad = _round_up(hid, 128)

    w1 = jnp.zeros((dim, h_pad), jnp.bfloat16).at[:, :hid].set(
        params["w1"].astype(jnp.bfloat16))
    b1 = jnp.zeros((1, h_pad), jnp.float32).at[0, :hid].set(params["b1"])
    w2 = jnp.zeros((h_pad, h_pad), jnp.bfloat16).at[:hid, :hid].set(
        params["w2"].astype(jnp.bfloat16))
    b2 = jnp.zeros((1, h_pad), jnp.float32).at[0, :hid].set(params["b2"])
    # lin3 weight stored as a single f32 row [1, h_pad] (transposed column).
    w3 = jnp.zeros((1, h_pad), jnp.float32).at[0, :hid].set(
        params["w3"][:, 0].astype(jnp.float32))
    b3 = params["b3"].reshape(1, 1).astype(jnp.float32)
    return {"w1": w1, "b1": b1, "w2": w2, "b2": b2, "w3": w3, "b3": b3}


@functools.partial(jax.jit, static_argnames=("batch_tile",))
def lipschitz_function_forward(x, prepared, *, batch_tile=512):
    """Pallas forward pass of LipschitzFunction.

    x: [N, dim] (any float dtype; treated like torch's x.float()).
    prepared: output of prepare_params().
    returns: [N, 1] float32.
    """
    n, dim = x.shape
    h_pad = prepared["w1"].shape[1]

    xf = x.astype(jnp.float32)

    # Batch tile: big tiles for big batches (MXU occupancy, fewer grid steps);
    # small batches shrink the tile instead of padding to 512; mid-size batches
    # split into >=2 tiles so v7x's two TensorCores both get a grid step.
    if n > batch_tile:
        bt = batch_tile
    else:
        bt = _round_up(n, 8)
        if n >= 256:
            bt = _round_up((n + 1) // 2, 8)
    n_pad = _round_up(n, bt)
    if n_pad != n:
        xf = jnp.zeros((n_pad, dim), jnp.float32).at[:n].set(xf)

    grid = (n_pad // bt,)
    fixed = lambda i: (0, 0)  # weights/biases: same full block every grid step

    out = pl.pallas_call(
        _lipschitz_mlp_kernel,
        out_shape=jax.ShapeDtypeStruct((n_pad, 1), jnp.float32),
        grid_spec=pltpu.PrefetchScalarGridSpec(
            num_scalar_prefetch=0,
            grid=grid,
            in_specs=[
                # x: feature dim left at its full (small) extent -> no 16x pad.
                pl.BlockSpec((bt, dim), lambda i: (i, 0)),
                pl.BlockSpec((dim, h_pad), fixed),    # w1 (bf16)
                pl.BlockSpec((1, h_pad), fixed),      # b1 (f32)
                pl.BlockSpec((h_pad, h_pad), fixed),  # w2 (bf16)
                pl.BlockSpec((1, h_pad), fixed),      # b2 (f32)
                pl.BlockSpec((1, h_pad), fixed),      # w3 row (f32)
                pl.BlockSpec((1, 1), fixed),          # b3 (f32)
            ],
            # Unpadded single-column output -> ~128x less writeback traffic.
            out_specs=pl.BlockSpec((bt, 1), lambda i: (i, 0)),
        ),
        compiler_params=pltpu.CompilerParams(
            dimension_semantics=("parallel",)),
    )(xf, prepared["w1"], prepared["b1"], prepared["w2"], prepared["b2"],
      prepared["w3"], prepared["b3"])

    return out[:n] if n_pad != n else out


def init_params(key, dim, hidden=200, out_dim=1):
    """Deterministic xavier_normal_ weights, zero biases (reset_parameters)."""
    k1, k2, k3 = jax.random.split(key, 3)

    def xavier_normal(k, fan_in, fan_out):
        std = (2.0 / (fan_in + fan_out)) ** 0.5
        # stored as [in, out] so the kernel computes x @ W
        return std * jax.random.normal(k, (fan_in, fan_out), jnp.float32)

    return {
        "w1": xavier_normal(k1, dim, hidden),
        "b1": jnp.zeros((hidden,), jnp.float32),
        "w2": xavier_normal(k2, hidden, hidden),
        "b2": jnp.zeros((hidden,), jnp.float32),
        "w3": xavier_normal(k3, hidden, out_dim),
        "b3": jnp.zeros((out_dim,), jnp.float32),
    }


def reference_forward(x, params):
    """Plain-JAX f32 reference matching the PyTorch module."""
    h = x.astype(jnp.float32) @ params["w1"] + params["b1"]
    h = _softplus(h)
    h = h @ params["w2"] + params["b2"]
    h = _softplus(h)
    return h @ params["w3"] + params["b3"]


if __name__ == "__main__":
    key = jax.random.PRNGKey(0)
    kx, kp = jax.random.split(key)

    dim = 8          # network input dimension
    batch = 16       # number of input samples

    params = init_params(kp, dim)
    prepared = prepare_params(params)            # padded/cast once, reused
    x = jax.random.normal(kx, (batch, dim), jnp.float32)

    out = lipschitz_function_forward(x, prepared)
    out = jax.block_until_ready(out)

    ref = reference_forward(x, params)
    assert out.shape == (batch, 1), out.shape
    # bf16 MXU operands (f32 accumulation) deviate slightly from the pure-f32
    # torch-style reference, hence the relaxed tolerance.
    assert jnp.allclose(out, ref, atol=3e-2, rtol=3e-2), (
        float(jnp.max(jnp.abs(out - ref))))

    print("KERNEL_OK")
</pallas_src>

<mosaic_0001>
module attributes {stable_mosaic.version = 11 : i64} {
  func.func @_lipschitz_mlp_kernel(%arg0: i32, %arg1: memref<16x8xf32, #tpu.memory_space<vmem>>, %arg2: memref<8x256xbf16, #tpu.memory_space<vmem>>, %arg3: memref<1x256xf32, #tpu.memory_space<vmem>>, %arg4: memref<256x256xbf16, #tpu.memory_space<vmem>>, %arg5: memref<1x256xf32, #tpu.memory_space<vmem>>, %arg6: memref<1x256xf32, #tpu.memory_space<vmem>>, %arg7: memref<1x1xf32, #tpu.memory_space<vmem>>, %arg8: memref<16x1xf32, #tpu.memory_space<vmem>>) attributes {dimension_semantics = [#tpu.dimension_semantics<parallel>], iteration_bounds = array<i64: 1>, scalar_prefetch = 0 : i64, scratch_operands = 0 : i64, tpu.core_type = #tpu.core_type<tc>, window_params = [{transform_indices = @transform_0, window_bounds = array<i64: 16, 8>}, {pipeline_mode = #tpu.pipeline_mode<synchronous>, transform_indices = @transform_1, window_bounds = array<i64: 8, 256>}, {pipeline_mode = #tpu.pipeline_mode<synchronous>, transform_indices = @transform_2, window_bounds = array<i64: 1, 256>}, {pipeline_mode = #tpu.pipeline_mode<synchronous>, transform_indices = @transform_3, window_bounds = array<i64: 256, 256>}, {pipeline_mode = #tpu.pipeline_mode<synchronous>, transform_indices = @transform_4, window_bounds = array<i64: 1, 256>}, {pipeline_mode = #tpu.pipeline_mode<synchronous>, transform_indices = @transform_5, window_bounds = array<i64: 1, 256>}, {pipeline_mode = #tpu.pipeline_mode<synchronous>, transform_indices = @transform_6, window_bounds = array<i64: 1, 1>}, {transform_indices = @transform_7, window_bounds = array<i64: 16, 1>}]} {
    %c0 = arith.constant 0 : index
    %c0_0 = arith.constant 0 : index
    %0 = vector.load %arg1[%c0, %c0_0] : memref<16x8xf32, #tpu.memory_space<vmem>>, vector<16x8xf32>
    %1 = arith.truncf %0 : vector<16x8xf32> to vector<16x8xbf16>
    %c0_1 = arith.constant 0 : index
    %c0_2 = arith.constant 0 : index
    %2 = vector.load %arg2[%c0_1, %c0_2] : memref<8x256xbf16, #tpu.memory_space<vmem>>, vector<8x256xbf16>
    %cst = arith.constant dense<0.000000e+00> : vector<16x256xf32>
    %3 = tpu.matmul %1, %2, %cst {dimension_numbers = #tpu.dot_dimension_numbers<[1], [0], [0], [1], [0, 0, 1, 1], [], []>} : vector<16x8xbf16>, vector<8x256xbf16>, vector<16x256xf32> -> vector<16x256xf32>
    %c0_3 = arith.constant 0 : index
    %c0_4 = arith.constant 0 : index
    %4 = vector.load %arg3[%c0_3, %c0_4] : memref<1x256xf32, #tpu.memory_space<vmem>>, vector<1x256xf32>
    %5 = vector.broadcast %4 : vector<1x256xf32> to vector<16x256xf32>
    %6 = arith.addf %3, %5 : vector<16x256xf32>
    %cst_5 = arith.constant 2.000000e+01 : f32
    %7 = vector.broadcast %cst_5 : f32 to vector<16x256xf32>
    %8 = arith.cmpf ogt, %6, %7 : vector<16x256xf32>
    %9 = math.exp %6 : vector<16x256xf32>
    %10 = math.log1p %9 : vector<16x256xf32>
    %11 = arith.select %8, %6, %10 : vector<16x256xi1>, vector<16x256xf32>
    %12 = arith.truncf %11 : vector<16x256xf32> to vector<16x256xbf16>
    %c0_6 = arith.constant 0 : index
    %c0_7 = arith.constant 0 : index
    %13 = vector.load %arg4[%c0_6, %c0_7] : memref<256x256xbf16, #tpu.memory_space<vmem>>, vector<256x256xbf16>
    %cst_8 = arith.constant dense<0.000000e+00> : vector<16x256xf32>
    %14 = tpu.matmul %12, %13, %cst_8 {dimension_numbers = #tpu.dot_dimension_numbers<[1], [0], [0], [1], [0, 0, 1, 1], [], []>} : vector<16x256xbf16>, vector<256x256xbf16>, vector<16x256xf32> -> vector<16x256xf32>
    %c0_9 = arith.constant 0 : index
    %c0_10 = arith.constant 0 : index
    %15 = vector.load %arg5[%c0_9, %c0_10] : memref<1x256xf32, #tpu.memory_space<vmem>>, vector<1x256xf32>
    %16 = vector.broadcast %15 : vector<1x256xf32> to vector<16x256xf32>
    %17 = arith.addf %14, %16 : vector<16x256xf32>
    %cst_11 = arith.constant 2.000000e+01 : f32
    %18 = vector.broadcast %cst_11 : f32 to vector<16x256xf32>
    %19 = arith.cmpf ogt, %17, %18 : vector<16x256xf32>
    %20 = math.exp %17 : vector<16x256xf32>
    %21 = math.log1p %20 : vector<16x256xf32>
    %22 = arith.select %19, %17, %21 : vector<16x256xi1>, vector<16x256xf32>
    %c0_12 = arith.constant 0 : index
    %c0_13 = arith.constant 0 : index
    %23 = vector.load %arg6[%c0_12, %c0_13] : memref<1x256xf32, #tpu.memory_space<vmem>>, vector<1x256xf32>
    %24 = vector.broadcast %23 : vector<1x256xf32> to vector<16x256xf32>
    %25 = arith.mulf %22, %24 : vector<16x256xf32>
    %cst_14 = arith.constant dense<0.000000e+00> : vector<16xf32>
    %26 = vector.multi_reduction <add>, %25, %cst_14 [1] : vector<16x256xf32> to vector<16xf32>
    %27 = vector.shape_cast %26 : vector<16xf32> to vector<16x1xf32>
    %c0_15 = arith.constant 0 : index
    %c0_16 = arith.constant 0 : index
    %28 = vector.load %arg7[%c0_15, %c0_16] : memref<1x1xf32, #tpu.memory_space<vmem>>, vector<1x1xf32>
    %29 = vector.broadcast %28 : vector<1x1xf32> to vector<16x1xf32>
    %30 = arith.addf %27, %29 : vector<16x1xf32>
    %c0_17 = arith.constant 0 : index
    %c0_18 = arith.constant 0 : index
    %31 = vector.load %arg8[%c0_17, %c0_18] : memref<16x1xf32, #tpu.memory_space<vmem>>, vector<16x1xf32>
    tpu.vector_store %arg8[%c0_17, %c0_18], %30 {strides = array<i32>} : memref<16x1xf32, #tpu.memory_space<vmem>>, vector<16x1xf32>,
    return
  }
  func.func @transform_0(%arg0: i32) -> (i32, i32) {
    %c0_i32 = arith.constant 0 : i32
    %c0_i32_0 = arith.constant 0 : i32
    return %arg0, %c0_i32 : i32, i32
  }
  func.func @transform_1(%arg0: i32) -> (i32, i32) {
    %c0_i32 = arith.constant 0 : i32
    %c0_i32_0 = arith.constant 0 : i32
    %c0_i32_1 = arith.constant 0 : i32
    return %c0_i32, %c0_i32_0 : i32, i32
  }
  func.func @transform_2(%arg0: i32) -> (i32, i32) {
    %c0_i32 = arith.constant 0 : i32
    %c0_i32_0 = arith.constant 0 : i32
    %c0_i32_1 = arith.constant 0 : i32
    return %c0_i32, %c0_i32_0 : i32, i32
  }
  func.func @transform_3(%arg0: i32) -> (i32, i32) {
    %c0_i32 = arith.constant 0 : i32
    %c0_i32_0 = arith.constant 0 : i32
    %c0_i32_1 = arith.constant 0 : i32
    return %c0_i32, %c0_i32_0 : i32, i32
  }
  func.func @transform_4(%arg0: i32) -> (i32, i32) {
    %c0_i32 = arith.constant 0 : i32
    %c0_i32_0 = arith.constant 0 : i32
    %c0_i32_1 = arith.constant 0 : i32
    return %c0_i32, %c0_i32_0 : i32, i32
  }
  func.func @transform_5(%arg0: i32) -> (i32, i32) {
    %c0_i32 = arith.constant 0 : i32
    %c0_i32_0 = arith.constant 0 : i32
    %c0_i32_1 = arith.constant 0 : i32
    return %c0_i32, %c0_i32_0 : i32, i32
  }
  func.func @transform_6(%arg0: i32) -> (i32, i32) {
    %c0_i32 = arith.constant 0 : i32
    %c0_i32_0 = arith.constant 0 : i32
    %c0_i32_1 = arith.constant 0 : i32
    return %c0_i32, %c0_i32_0 : i32, i32
  }
  func.func @transform_7(%arg0: i32) -> (i32, i32) {
    %c0_i32 = arith.constant 0 : i32
    %c0_i32_0 = arith.constant 0 : i32
    return %arg0, %c0_i32 : i32, i32
  }
}

</mosaic_0001>

<llo_original>
// kernel: lipschitz_function_forward.1
$region0: #{lipschitz_function_forward.1}
  #allocation0 [shape = 'u32[]', space=smem, size = 0x4, offset = 0x4, fixed_abs, tag = 'smem constant byte address 0x4 - core index']
  #allocation1 [shape = 'u32[144,128]{1,0:T(1,128)}', space=vmem, size = 0x12000, scoped, tag = 'internal scratch']
  #allocation2 [shape = 'f32[1,1]{1,0:T(1,128)S(1)}', space=vmem, size = 0x200, scoped, tag = 'scoped memory for lipschitz_function_forward.1']
  %s0 = inlined_call_operand.vmem [shape: f32[16,8], index: 0, kind: input, shape index: {}]
  %s1 = inlined_call_operand.vmem [shape: bf16[8,256], index: 1, kind: input, shape index: {}]
  %s2 = inlined_call_operand.vmem [shape: f32[1,256], index: 2, kind: input, shape index: {}]
  %s3 = inlined_call_operand.hbm [shape: bf16[256,256], index: 3, kind: input, shape index: {}]
  %s4 = inlined_call_operand.vmem [shape: f32[1,256], index: 4, kind: input, shape index: {}]
  %s5 = inlined_call_operand.vmem [shape: f32[1,256], index: 5, kind: input, shape index: {}]
  %s6 = inlined_call_operand.<no memory space> [shape: f32[1,1], index: 6, kind: input, shape index: {}]
  %s7 = inlined_call_operand.vmem [shape: f32[16,1], index: 7, kind: output, shape index: {}]
  %s8 = sld [smem:[#allocation0]]
  $region42: #{lipschitz_function_forward.1} parent=0
    _
  %s10 = ssub.s32 1, %s8
  %s11 = scalar_select 0, %s10, %s8
  %v12 = vstv %s6
  %13 = vst [vmem:[#allocation2] sm:$0x1] %v12
  $region1: #{lipschitz_function_forward.1} parent=0
    #allocation3 [shape = 'u8[131072]{0}', space=vmem, size = 0x20000, scoped, tag = 'input window, operand 3, single buffered']
    #allocation4 [shape = 's32[1]{0}', space=sflag, size = 0x4, scoped, tag = 'scoped memory for lipschitz_function_forward.1']
    %14 = vsyncpa [#allocation4], 0
    // Predicated region
    $region2: #{lipschitz_function_forward.1} parent=1 // pred_check
      _
    $region3: #{lipschitz_function_forward.1} parent=1 // pred_check_branch
      %16 = sbr.rel (0) target = $region5
    $region4: #{lipschitz_function_forward.1} parent=1 // pred_region
      _
    $region5: #{lipschitz_function_forward.1} parent=1 // pred_fallthru
      _
    // Predicated region
    $region6: #{lipschitz_function_forward.1} parent=1 // pred_check
      _
    $region7: #{lipschitz_function_forward.1} parent=1 // pred_check_branch
      %18 = sbr.rel (0) target = $region9
    $region8: #{lipschitz_function_forward.1} parent=1 // pred_region
      _
    $region9: #{lipschitz_function_forward.1} parent=1 // pred_fallthru
      _
    // Predicated region
    $region10: #{lipschitz_function_forward.1} parent=1 // pred_check
      _
    $region11: #{lipschitz_function_forward.1} parent=1 // pred_check_branch
      %20 = sbr.rel (0) target = $region13
    $region12: #{lipschitz_function_forward.1} parent=1 // pred_region
      _
    $region13: #{lipschitz_function_forward.1} parent=1 // pred_fallthru
      _
    // Predicated region
    $region14: #{lipschitz_function_forward.1} parent=1 // pred_check
      _
    $region15: #{lipschitz_function_forward.1} parent=1 // pred_check_branch
      %22 = sbr.rel (0) target = $region17
    $region16: #{lipschitz_function_forward.1} parent=1 // pred_region
      %s24 = ssub.s32 4096, 4096
      %25 = vsyncadd [#allocation4], %s24
      %s26 = sshll.u32 [#allocation3], 4
      %s27 = int_to_ptr.vmem [resolvable:$true] %s26
      %32 = dma.hbm_to_vmem [thread:$0]  %s3, 4096, %s27, [#allocation4], 128, 128, 8
    $region17: #{lipschitz_function_forward.1} parent=1 // pred_fallthru
      _
    // Predicated region
    $region18: #{lipschitz_function_forward.1} parent=1 // pred_check
      _
    $region19: #{lipschitz_function_forward.1} parent=1 // pred_check_branch
      %34 = sbr.rel (0) target = $region21
    $region20: #{lipschitz_function_forward.1} parent=1 // pred_region
      _
    $region21: #{lipschitz_function_forward.1} parent=1 // pred_fallthru
      _
    // Predicated region
    $region22: #{lipschitz_function_forward.1} parent=1 // pred_check
      _
    $region23: #{lipschitz_function_forward.1} parent=1 // pred_check_branch
      %36 = sbr.rel (0) target = $region25
    $region24: #{lipschitz_function_forward.1} parent=1 // pred_region
      _
    $region25: #{lipschitz_function_forward.1} parent=1 // pred_fallthru
      _
    // Predicated region
    $region26: #{lipschitz_function_forward.1} parent=1 // pred_check
      _
    $region27: #{lipschitz_function_forward.1} parent=1 // pred_check_branch
      %38 = sbr.rel (0) target = $region29
    $region28: #{lipschitz_function_forward.1} parent=1 // pred_region
      _
    $region29: #{lipschitz_function_forward.1} parent=1 // pred_fallthru
      _
    // Predicated region
    $region30: #{lipschitz_function_forward.1} parent=1 // pred_check
      _
    $region31: #{lipschitz_function_forward.1} parent=1 // pred_check_branch
      %40 = sbr.rel (0) target = $region33
    $region32: #{lipschitz_function_forward.1} parent=1 // pred_region
      %41 = dma.done [#allocation4], 4096
    $region33: #{lipschitz_function_forward.1} parent=1 // pred_fallthru
      _
    %v43 = vld [vmem:[%s0] sm:$0xff]
    %v44 = vld [vmem:[%s0 + $0x8] sm:$0xff]
    %v45 = vpack.c.bf16 %v44, %v43
    %v46 = vld [vmem:[%s1] sm:$0xff]
    %v47 = vld [vmem:[%s2] sm:$0x3]
    %v49 = vlaneseq
    %v50 = vshrl.u32 %v49, 7
    %v51 = vsub.s32 0, %v50
    %v52 = vrot.slane %v47, %v51
    %v53 = vlaneseq
    %v54 = vshrl.u32 %v53, 7
    %v55 = vsub.s32 1, %v54
    %v56 = vrot.slane %v47, %v55
    %v60 = vunpack.c.l.b16 %v46
    %v61 = vunpack.c.h.b16 %v46
    %v62 = vpack.c.b16 %v60, %v60
    %v63 = vpack.c.b16 %v61, %v61
    %vm64 = vcmask 64512
    %v66 = vsel %vm64, %v45, 0
    %vm68 = vcmask 1043456
    %v70 = vsel %vm68, %v62, 0
    %v73 = vsel %vm68, %v63, 0
    %75 = vmatprep.subr.bf16.mxu0 %v73
    %76 = vmatpush1.bf16.msra.mxu0 %v70
    %77 = vmatprep.subr.bf16.mxu0 0
    %78 = vmatpush1.bf16.msra.mxu0 0
    %79 = vmatprep.subr.bf16.mxu0 0
    %80 = vmatpush1.bf16.msra.mxu0 0
    %81 = vmatprep.subr.bf16.mxu0 0
    %82 = vmatpush1.bf16.msra.mxu0 0
    %83 = vmatprep.subr.bf16.mxu0 0
    %84 = vmatpush1.bf16.msra.mxu0 0
    %85 = vmatprep.subr.bf16.mxu0 0
    %86 = vmatpush1.bf16.msra.mxu0 0
    %87 = vmatprep.subr.bf16.mxu0 0
    %88 = vmatpush1.bf16.msra.mxu0 0
    %89 = vmatprep.subr.bf16.mxu0 0
    %90 = vmatpush1.bf16.msra.mxu0 0
    %91 = vmatprep.subr.bf16.mxu0 0
    %92 = vmatpush1.bf16.msra.mxu0 0
    %93 = vmatprep.subr.bf16.mxu0 0
    %94 = vmatpush1.bf16.msra.mxu0 0
    %95 = vmatprep.subr.bf16.mxu0 0
    %96 = vmatpush1.bf16.msra.mxu0 0
    %97 = vmatprep.subr.bf16.mxu0 0
    %98 = vmatpush1.bf16.msra.mxu0 0
    %99 = vmatprep.subr.bf16.mxu0 0
    %100 = vmatpush1.bf16.msra.mxu0 0
    %101 = vmatprep.subr.bf16.mxu0 0
    %102 = vmatpush1.bf16.msra.mxu0 0
    %103 = vmatprep.subr.bf16.mxu0 0
    %104 = vmatpush1.bf16.msra.mxu0 0
    %105 = vmatprep.subr.bf16.mxu0 0
    %106 = vmatpush1.bf16.msra.mxu0 0
    %107 = vmatprep.mubr.bf16.mxu0 0
    %108 = vmatmul.mubr.bf16.gmra.mrb[0].mxu0 %v66
    %v109 = vpop.f32.mrb[0].mxu0
    %v110 = vadd.f32 %v52, %v109
    %v111 = vpop.f32.mrb[0].mxu0
    %v112 = vadd.f32 %v56, %v111
    %v113 = vpop.f32.mrb[0].mxu0
    %v114 = vadd.f32 %v52, %v113
    %v115 = vpop.f32.mrb[0].mxu0
    %v116 = vadd.f32 %v56, %v115
    %117 = vdwg.mxu0
    %vm118 = vcmp.gt.f32.partialorder %v110, 20.0
    %vm119 = vcmp.gt.f32.partialorder %v112, 20.0
    %vm120 = vcmp.gt.f32.partialorder %v114, 20.0
    %vm121 = vcmp.gt.f32.partialorder %v116, 20.0
    %v122 = vmul.f32 %v110, 1.442695
    %v123 = vpow.pop %v122
    %v124 = vmul.f32 %v112, 1.442695
    %v125 = vpow.pop %v124
    %v126 = vmul.f32 %v114, 1.442695
    %v127 = vpow.pop %v126
    %v128 = vmul.f32 %v116, 1.442695
    %v129 = vpow.pop %v128
    %v130 = vadd.f32 %v123, 1.0
    %v131 = vlog2.pop %v130
    %v132 = vmul.f32 %v131, 0.6931472
    %v133 = vmul.f32 -0.5, %v123
    %v134 = vadd.f32 %v133, 1.0
    %v135 = vmul.f32 %v134, %v123
    %v136 = vand.u32 2147483647, %v123
    %vm137 = vcmp.lt.f32.partialorder %v136, 0.0004427343
    %v138 = vsel %vm137, %v135, %v132
    %v139 = vadd.f32 %v125, 1.0
    %v140 = vlog2.pop %v139
    %v141 = vmul.f32 %v140, 0.6931472
    %v142 = vmul.f32 -0.5, %v125
    %v143 = vadd.f32 %v142, 1.0
    %v144 = vmul.f32 %v143, %v125
    %v145 = vand.u32 2147483647, %v125
    %vm146 = vcmp.lt.f32.partialorder %v145, 0.0004427343
    %v147 = vsel %vm146, %v144, %v141
    %v148 = vadd.f32 %v127, 1.0
    %v149 = vlog2.pop %v148
    %v150 = vmul.f32 %v149, 0.6931472
    %v151 = vmul.f32 -0.5, %v127
    %v152 = vadd.f32 %v151, 1.0
    %v153 = vmul.f32 %v152, %v127
    %v154 = vand.u32 2147483647, %v127
    %vm155 = vcmp.lt.f32.partialorder %v154, 0.0004427343
    %v156 = vsel %vm155, %v153, %v150
    %v157 = vadd.f32 %v129, 1.0
    %v158 = vlog2.pop %v157
    %v159 = vmul.f32 %v158, 0.6931472
    %v160 = vmul.f32 -0.5, %v129
    %v161 = vadd.f32 %v160, 1.0
    %v162 = vmul.f32 %v161, %v129
    %v163 = vand.u32 2147483647, %v129
    %vm164 = vcmp.lt.f32.partialorder %v163, 0.0004427343
    %v165 = vsel %vm164, %v162, %v159
    %v166 = vsel %vm118, %v110, %v138
    %v167 = vsel %vm119, %v112, %v147
    %v168 = vsel %vm120, %v114, %v156
    %v169 = vsel %vm121, %v116, %v165
    %v170 = vpack.c.bf16 %v168, %v166
    %v171 = vpack.c.bf16 %v169, %v167
    %v172 = vld [vmem:[#allocation3] sm:$0xff]
    %v173 = vld [vmem:[#allocation3 + $0x8] sm:$0xff]
    %v174 = vld [vmem:[#allocation3 + $0x10] sm:$0xff]
    %v175 = vld [vmem:[#allocation3 + $0x18] sm:$0xff]
    %v176 = vld [vmem:[#allocation3 + $0x20] sm:$0xff]
    %v177 = vld [vmem:[#allocation3 + $0x28] sm:$0xff]
    %v178 = vld [vmem:[#allocation3 + $0x30] sm:$0xff]
    %v179 = vld [vmem:[#allocation3 + $0x38] sm:$0xff]
    %v180 = vld [vmem:[#allocation3 + $0x40] sm:$0xff]
    %v181 = vld [vmem:[#allocation3 + $0x48] sm:$0xff]
    %v182 = vld [vmem:[#allocation3 + $0x50] sm:$0xff]
    %v183 = vld [vmem:[#allocation3 + $0x58] sm:$0xff]
    %v184 = vld [vmem:[#allocation3 + $0x60] sm:$0xff]
    %v185 = vld [vmem:[#allocation3 + $0x68] sm:$0xff]
    %v186 = vld [vmem:[#allocation3 + $0x70] sm:$0xff]
    %v187 = vld [vmem:[#allocation3 + $0x78] sm:$0xff]
    %v188 = vld [vmem:[#allocation3 + $0x80] sm:$0xff]
    %v189 = vld [vmem:[#allocation3 + $0x88] sm:$0xff]
    %v190 = vld [vmem:[#allocation3 + $0x90] sm:$0xff]
    %v191 = vld [vmem:[#allocation3 + $0x98] sm:$0xff]
    %v192 = vld [vmem:[#allocation3 + $0xa0] sm:$0xff]
    %v193 = vld [vmem:[#allocation3 + $0xa8] sm:$0xff]
    %v194 = vld [vmem:[#allocation3 + $0xb0] sm:$0xff]
    %v195 = vld [vmem:[#allocation3 + $0xb8] sm:$0xff]
    %v196 = vld [vmem:[#allocation3 + $0xc0] sm:$0xff]
    %v197 = vld [vmem:[#allocation3 + $0xc8] sm:$0xff]
    %v198 = vld [vmem:[#allocation3 + $0xd0] sm:$0xff]
    %v199 = vld [vmem:[#allocation3 + $0xd8] sm:$0xff]
    %v200 = vld [vmem:[#allocation3 + $0xe0] sm:$0xff]
    %v201 = vld [vmem:[#allocation3 + $0xe8] sm:$0xff]
    %v202 = vld [vmem:[#allocation3 + $0xf0] sm:$0xff]
    %v203 = vld [vmem:[#allocation3 + $0xf8] sm:$0xff]
    %v204 = vld [vmem:[%s4] sm:$0x3]
    %v206 = vlaneseq
    %v207 = vshrl.u32 %v206, 7
    %v208 = vsub.s32 0, %v207
    %v209 = vrot.slane %v204, %v208
    %v210 = vlaneseq
    %v211 = vshrl.u32 %v210, 7
    %v212 = vsub.s32 1, %v211
    %v213 = vrot.slane %v204, %v212
    %v248 = vunpack.c.l.b16 %v172
    %v249 = vunpack.c.h.b16 %v172
    %v250 = vunpack.c.l.b16 %v173
    %v251 = vunpack.c.h.b16 %v173
    %v252 = vunpack.c.l.b16 %v174
    %v253 = vunpack.c.h.b16 %v174
    %v254 = vunpack.c.l.b16 %v175
    %v255 = vunpack.c.h.b16 %v175
    %v256 = vunpack.c.l.b16 %v176
    %v257 = vunpack.c.h.b16 %v176
    %v258 = vunpack.c.l.b16 %v177
    %v259 = vunpack.c.h.b16 %v177
    %v260 = vunpack.c.l.b16 %v178
    %v261 = vunpack.c.h.b16 %v178
    %v262 = vunpack.c.l.b16 %v179
    %v263 = vunpack.c.h.b16 %v179
    %v264 = vunpack.c.l.b16 %v180
    %v265 = vunpack.c.h.b16 %v180
    %v266 = vunpack.c.l.b16 %v181
    %v267 = vunpack.c.h.b16 %v181
    %v268 = vunpack.c.l.b16 %v182
    %v269 = vunpack.c.h.b16 %v182
    %v270 = vunpack.c.l.b16 %v183
    %v271 = vunpack.c.h.b16 %v183
    %v272 = vunpack.c.l.b16 %v184
    %v273 = vunpack.c.h.b16 %v184
    %v274 = vunpack.c.l.b16 %v185
    %v275 = vunpack.c.h.b16 %v185
    %v276 = vunpack.c.l.b16 %v186
    %v277 = vunpack.c.h.b16 %v186
    %v278 = vunpack.c.l.b16 %v187
    %v279 = vunpack.c.h.b16 %v187
    %v280 = vunpack.c.l.b16 %v188
    %v281 = vunpack.c.h.b16 %v188
    %v282 = vunpack.c.l.b16 %v189
    %v283 = vunpack.c.h.b16 %v189
    %v284 = vunpack.c.l.b16 %v190
    %v285 = vunpack.c.h.b16 %v190
    %v286 = vunpack.c.l.b16 %v191
    %v287 = vunpack.c.h.b16 %v191
    %v288 = vunpack.c.l.b16 %v192
    %v289 = vunpack.c.h.b16 %v192
    %v290 = vunpack.c.l.b16 %v193
    %v291 = vunpack.c.h.b16 %v193
    %v292 = vunpack.c.l.b16 %v194
    %v293 = vunpack.c.h.b16 %v194
    %v294 = vunpack.c.l.b16 %v195
    %v295 = vunpack.c.h.b16 %v195
    %v296 = vunpack.c.l.b16 %v196
    %v297 = vunpack.c.h.b16 %v196
    %v298 = vunpack.c.l.b16 %v197
    %v299 = vunpack.c.h.b16 %v197
    %v300 = vunpack.c.l.b16 %v198
    %v301 = vunpack.c.h.b16 %v198
    %v302 = vunpack.c.l.b16 %v199
    %v303 = vunpack.c.h.b16 %v199
    %v304 = vunpack.c.l.b16 %v200
    %v305 = vunpack.c.h.b16 %v200
    %v306 = vunpack.c.l.b16 %v201
    %v307 = vunpack.c.h.b16 %v201
    %v308 = vunpack.c.l.b16 %v202
    %v309 = vunpack.c.h.b16 %v202
    %v310 = vunpack.c.l.b16 %v203
    %v311 = vunpack.c.h.b16 %v203
    %v312 = vpack.c.b16 %v250, %v248
    %v313 = vpack.c.b16 %v251, %v249
    %v314 = vpack.c.b16 %v254, %v252
    %v315 = vpack.c.b16 %v255, %v253
    %v316 = vpack.c.b16 %v258, %v256
    %v317 = vpack.c.b16 %v259, %v257
    %v318 = vpack.c.b16 %v262, %v260
    %v319 = vpack.c.b16 %v263, %v261
    %v320 = vpack.c.b16 %v266, %v264
    %v321 = vpack.c.b16 %v267, %v265
    %v322 = vpack.c.b16 %v270, %v268
    %v323 = vpack.c.b16 %v271, %v269
    %v324 = vpack.c.b16 %v274, %v272
    %v325 = vpack.c.b16 %v275, %v273
    %v326 = vpack.c.b16 %v278, %v276
    %v327 = vpack.c.b16 %v279, %v277
    %v328 = vpack.c.b16 %v282, %v280
    %v329 = vpack.c.b16 %v283, %v281
    %v330 = vpack.c.b16 %v286, %v284
    %v331 = vpack.c.b16 %v287, %v285
    %v332 = vpack.c.b16 %v290, %v288
    %v333 = vpack.c.b16 %v291, %v289
    %v334 = vpack.c.b16 %v294, %v292
    %v335 = vpack.c.b16 %v295, %v293
    %v336 = vpack.c.b16 %v298, %v296
    %v337 = vpack.c.b16 %v299, %v297
    %v338 = vpack.c.b16 %v302, %v300
    %v339 = vpack.c.b16 %v303, %v301
    %v340 = vpack.c.b16 %v306, %v304
    %v341 = vpack.c.b16 %v307, %v305
    %v342 = vpack.c.b16 %v310, %v308
    %v343 = vpack.c.b16 %v311, %v309
    %376 = vmatprep.subr.bf16.mxu0 %v313
    %377 = vmatpush1.bf16.msra.mxu0 %v312
    %378 = vmatprep.subr.bf16.mxu0 %v315
    %379 = vmatpush1.bf16.msra.mxu0 %v314
    %380 = vmatprep.subr.bf16.mxu0 %v317
    %381 = vmatpush1.bf16.msra.mxu0 %v316
    %382 = vmatprep.subr.bf16.mxu0 %v319
    %383 = vmatpush1.bf16.msra.mxu0 %v318
    %384 = vmatprep.subr.bf16.mxu0 %v321
    %385 = vmatpush1.bf16.msra.mxu0 %v320
    %386 = vmatprep.subr.bf16.mxu0 %v323
    %387 = vmatpush1.bf16.msra.mxu0 %v322
    %388 = vmatprep.subr.bf16.mxu0 %v325
    %389 = vmatpush1.bf16.msra.mxu0 %v324
    %390 = vmatprep.subr.bf16.mxu0 %v327
    %391 = vmatpush1.bf16.msra.mxu0 %v326
    %392 = vmatprep.subr.bf16.mxu0 %v329
    %393 = vmatpush1.bf16.msra.mxu0 %v328
    %394 = vmatprep.subr.bf16.mxu0 %v331
    %395 = vmatpush1.bf16.msra.mxu0 %v330
    %396 = vmatprep.subr.bf16.mxu0 %v333
    %397 = vmatpush1.bf16.msra.mxu0 %v332
    %398 = vmatprep.subr.bf16.mxu0 %v335
    %399 = vmatpush1.bf16.msra.mxu0 %v334
    %400 = vmatprep.subr.bf16.mxu0 %v337
    %401 = vmatpush1.bf16.msra.mxu0 %v336
    %402 = vmatprep.subr.bf16.mxu0 %v339
    %403 = vmatpush1.bf16.msra.mxu0 %v338
    %404 = vmatprep.subr.bf16.mxu0 %v341
    %405 = vmatpush1.bf16.msra.mxu0 %v340
    %406 = vmatprep.subr.bf16.mxu0 %v343
    %407 = vmatpush1.bf16.msra.mxu0 %v342
    %408 = vmatprep.mubr.bf16.mxu0 %v171
    %409 = vmatmul.mubr.bf16.gmra.mrb[0].mxu0 %v170
    %v410 = vpop.f32.mrb[0].mxu0
    %v411 = vadd.f32 %v209, %v410
    %v412 = vpop.f32.mrb[0].mxu0
    %v413 = vadd.f32 %v213, %v412
    %v414 = vpop.f32.mrb[0].mxu0
    %v415 = vadd.f32 %v209, %v414
    %v416 = vpop.f32.mrb[0].mxu0
    %v417 = vadd.f32 %v213, %v416
    %418 = vdwg.mxu0
    %vm419 = vcmp.gt.f32.partialorder %v411, 20.0
    %vm420 = vcmp.gt.f32.partialorder %v413, 20.0
    %vm421 = vcmp.gt.f32.partialorder %v415, 20.0
    %vm422 = vcmp.gt.f32.partialorder %v417, 20.0
    %v423 = vmul.f32 %v411, 1.442695
    %v424 = vpow.pop %v423
    %v425 = vmul.f32 %v413, 1.442695
    %v426 = vpow.pop %v425
    %v427 = vmul.f32 %v415, 1.442695
    %v428 = vpow.pop %v427
    %v429 = vmul.f32 %v417, 1.442695
    %v430 = vpow.pop %v429
    %v431 = vadd.f32 %v424, 1.0
    %v432 = vlog2.pop %v431
    %v433 = vmul.f32 %v432, 0.6931472
    %v434 = vmul.f32 -0.5, %v424
    %v435 = vadd.f32 %v434, 1.0
    %v436 = vmul.f32 %v435, %v424
    %v437 = vand.u32 2147483647, %v424
    %vm438 = vcmp.lt.f32.partialorder %v437, 0.0004427343
    %v439 = vsel %vm438, %v436, %v433
    %v440 = vadd.f32 %v426, 1.0
    %v441 = vlog2.pop %v440
    %v442 = vmul.f32 %v441, 0.6931472
    %v443 = vmul.f32 -0.5, %v426
    %v444 = vadd.f32 %v443, 1.0
    %v445 = vmul.f32 %v444, %v426
    %v446 = vand.u32 2147483647, %v426
    %vm447 = vcmp.lt.f32.partialorder %v446, 0.0004427343
    %v448 = vsel %vm447, %v445, %v442
    %v449 = vadd.f32 %v428, 1.0
    %v450 = vlog2.pop %v449
    %v451 = vmul.f32 %v450, 0.6931472
    %v452 = vmul.f32 -0.5, %v428
    %v453 = vadd.f32 %v452, 1.0
    %v454 = vmul.f32 %v453, %v428
    %v455 = vand.u32 2147483647, %v428
    %vm456 = vcmp.lt.f32.partialorder %v455, 0.0004427343
    %v457 = vsel %vm456, %v454, %v451
    %v458 = vadd.f32 %v430, 1.0
    %v459 = vlog2.pop %v458
    %v460 = vmul.f32 %v459, 0.6931472
    %v461 = vmul.f32 -0.5, %v430
    %v462 = vadd.f32 %v461, 1.0
    %v463 = vmul.f32 %v462, %v430
    %v464 = vand.u32 2147483647, %v430
    %vm465 = vcmp.lt.f32.partialorder %v464, 0.0004427343
    %v466 = vsel %vm465, %v463, %v460
    %v467 = vsel %vm419, %v411, %v439
    %v468 = vsel %vm420, %v413, %v448
    %v469 = vsel %vm421, %v415, %v457
    %v470 = vsel %vm422, %v417, %v466
    %v471 = vld [vmem:[%s5] sm:$0x3]
    %v473 = vlaneseq
    %v474 = vshrl.u32 %v473, 7
    %v475 = vsub.s32 0, %v474
    %v476 = vrot.slane %v471, %v475
    %v477 = vlaneseq
    %v478 = vshrl.u32 %v477, 7
    %v479 = vsub.s32 1, %v478
    %v480 = vrot.slane %v471, %v479
    %v483 = vmul.f32 %v467, %v476
    %v484 = vmul.f32 %v468, %v480
    %v485 = vmul.f32 %v469, %v476
    %v486 = vmul.f32 %v470, %v480
    %v487 = vadd.f32 %v483, %v484
    %488 = vadd.xlane.f32.xlu0 %v487
    %v489 = vpop.xlane.xlu0 %488
    %v490 = vadd.f32 %v485, %v486
    %491 = vadd.xlane.f32.xlu0 %v490
    %v492 = vpop.xlane.xlu0 %491
    %v493 = vld [vmem:[#allocation2] sm:$0x1]
    %v495 = vlaneseq
    %v496 = vshrl.u32 %v495, 7
    %v497 = vsub.s32 0, %v496
    %v498 = vrot.slane %v493, %v497
    %v500 = vadd.f32 %v489, %v498
    %v501 = vadd.f32 %v492, %v498
    %vm502 = vcmask 7168
    %503 = vst.msk [vmem:[%s7] sm:$0xff] %vm502, %v500
    %504 = vst.msk [vmem:[%s7 + $0x8] sm:$0xff] %vm502, %v501
    // Predicated region
    $region34: #{lipschitz_function_forward.1} parent=1 // pred_check
      _
    $region35: #{lipschitz_function_forward.1} parent=1 // pred_check_branch
      %506 = sbr.rel (0) target = $region37
    $region36: #{lipschitz_function_forward.1} parent=1 // pred_region
      _
    $region37: #{lipschitz_function_forward.1} parent=1 // pred_fallthru
      _
    // Predicated region
    $region38: #{lipschitz_function_forward.1} parent=1 // pred_check
      _
    $region39: #{lipschitz_function_forward.1} parent=1 // pred_check_branch
      %508 = sbr.rel (0) target = $region41
    $region40: #{lipschitz_function_forward.1} parent=1 // pred_region
      _
    $region41: #{lipschitz_function_forward.1} parent=1 // pred_fallthru
      _
    %509 = vsyncpa [#allocation4], 1

</llo_original>
